<compile_context>
chip_gen: v6e
topology: v6e:2x2x1
jax: 0.10.0
libtpu: 0.0.40
codegen_flags: <defaults>
</compile_context>

<pallas_src>
import functools
import math

import jax
import jax.numpy as jnp
from jax.experimental import pallas as pl
from jax.experimental.pallas import tpu as pltpu


def _round_up(x: int, m: int) -> int:
    return ((x + m - 1) // m) * m


def _arcface_kernel(x_ref, w_ref, lab_ref, ms_ref, out_ref, *,
                    k: int, s: float, tn: int, training: bool):
    # x_ref  : (TB, D)     compute dtype (bf16 default), already L2-normalized
    # w_ref  : (k, D, TN)  compute dtype, already L2-normalized per subcenter
    # lab_ref: (TB, 1)     int32
    # ms_ref : (TB, 1)     f32  -- per-row adaptive margin margins[label]
    # out_ref: (TB, TN)    f32
    x = x_ref[...]

    # cosine = max over k subcenters of  x_norm @ W_j_norm   (MXU, f32 accum).
    cosine = jnp.dot(x, w_ref[0], preferred_element_type=jnp.float32)
    for j in range(1, k):                                    # k is small & static
        cosine = jnp.maximum(
            cosine, jnp.dot(x, w_ref[j], preferred_element_type=jnp.float32))

    if not training:
        out_ref[...] = cosine
        return

    tb = cosine.shape[0]
    labels = lab_ref[...]                                    # (TB, 1) int32
    col0 = pl.program_id(0) * tn                             # first class of tile
    gcol = col0 + jax.lax.broadcasted_iota(jnp.int32, (tb, tn), 1)
    onehot = gcol == labels                                  # (TB, TN) bool

    # cosine at the labeled column of each row; 0 if the label is not in this
    # C tile (in that case it is never used -- onehot is all-false).
    cos_lab = jnp.sum(jnp.where(onehot, cosine, 0.0), axis=-1, keepdims=True)

    ms = ms_ref[...]                                         # (TB, 1) f32
    cos_m = jnp.cos(ms)
    sin_m = jnp.sin(ms)
    th = -cos_m                                              # cos(pi - m)
    mm = sin_m * ms                                          # sin(pi - m) * m

    sine_lab = jnp.sqrt(jnp.clip(1.0 - cos_lab * cos_lab, 0.0, 1.0))
    phi = cos_lab * cos_m - sine_lab * sin_m                 # (TB, 1)
    phi = jnp.where(cos_lab > th, phi, cos_lab - mm)         # (TB, 1)

    out_ref[...] = jnp.where(onehot, phi, cosine) * s


def arcface_subcenter_forward(features, weight_pt, labels, margins, *,
                              k: int = 3, s: float = 30.0, training: bool = True,
                              tb: int = 128, tn: int = 512,
                              compute_dtype=jnp.bfloat16):
    """features: (B, D); weight_pt: (C*k, D) PyTorch-layout parameter;
    labels: (B,) int (may be None when not training); margins: (C,).
    Returns (B, C) f32 logits (scaled arcface logits when training)."""
    B, D = features.shape
    Ck, D2 = weight_pt.shape
    assert D2 == D
    C = Ck // k
    if labels is None:
        labels = jnp.zeros((B,), dtype=jnp.int32)

    # Tile sizes: multiples of (8, 128), clamped to the (padded) problem size.
    tb = min(_round_up(tb, 8), _round_up(B, 8))
    tn = min(_round_up(tn, 128), _round_up(C, 128))
    B_pad = _round_up(B, tb)
    C_pad = _round_up(C, tn)
    D_pad = _round_up(D, 128)

    # ---- one-time preprocessing (tiny vs. the weight stream; in a real model
    # the normalized / laid-out weight would be cached across forward calls) ----
    x = features.astype(jnp.float32)
    x_norm = x / jnp.maximum(jnp.sqrt(jnp.sum(x * x, axis=1, keepdims=True)), 1e-12)
    x_norm = jnp.pad(x_norm, ((0, B_pad - B), (0, D_pad - D))).astype(compute_dtype)

    # PyTorch weight row (c*k + j) is subcenter j of class c.
    w = weight_pt.astype(jnp.float32).reshape(C, k, D)
    w = w / jnp.maximum(jnp.sqrt(jnp.sum(w * w, axis=-1, keepdims=True)), 1e-12)
    w = jnp.pad(w, ((0, C_pad - C), (0, 0), (0, D_pad - D)))     # padded cols -> cosine 0
    w_kdc = jnp.transpose(w, (1, 2, 0)).astype(compute_dtype)    # (k, D_pad, C_pad)

    labels_i = jnp.pad(labels.astype(jnp.int32), (0, B_pad - B)).reshape(B_pad, 1)
    ms = jnp.take(margins.astype(jnp.float32), labels.astype(jnp.int32))
    ms = jnp.pad(ms, (0, B_pad - B)).reshape(B_pad, 1)

    nb = B_pad // tb
    nc = C_pad // tn

    itm = jnp.dtype(compute_dtype).itemsize
    vmem_est = (2 * k * D_pad * tn * itm      # weight, double buffered
                + 2 * tb * D_pad * itm        # features
                + 2 * tb * tn * 4             # output
                + 4 * tb * 8)                 # labels + margins
    vmem_limit = int(min(56 * 2**20, max(32 * 2**20, 2 * vmem_est)))

    kernel = functools.partial(_arcface_kernel, k=k, s=float(s), tn=tn,
                               training=training)

    out = pl.pallas_call(
        kernel,
        out_shape=jax.ShapeDtypeStruct((B_pad, C_pad), jnp.float32),
        grid=(nc, nb),   # C tiles outer: each weight tile is reused over all B tiles
        in_specs=[
            pl.BlockSpec((tb, D_pad), lambda j, i: (i, 0)),
            pl.BlockSpec((k, D_pad, tn), lambda j, i: (0, 0, j)),
            pl.BlockSpec((tb, 1), lambda j, i: (i, 0)),
            pl.BlockSpec((tb, 1), lambda j, i: (i, 0)),
        ],
        out_specs=pl.BlockSpec((tb, tn), lambda j, i: (i, j)),
        compiler_params=pltpu.CompilerParams(
            dimension_semantics=("parallel", "parallel"),
            vmem_limit_bytes=vmem_limit),
    )(x_norm, w_kdc, labels_i, ms)

    if B_pad != B or C_pad != C:
        out = out[:B, :C]
    return out


def _reference_forward(features, weight_pt, labels, margins, *, k, s, training):
    """Pure-JAX reference mirroring the PyTorch module."""
    x = features.astype(jnp.float32)
    x = x / jnp.maximum(jnp.sqrt(jnp.sum(x * x, axis=1, keepdims=True)), 1e-12)
    w = weight_pt.astype(jnp.float32)
    w = w / jnp.maximum(jnp.sqrt(jnp.sum(w * w, axis=1, keepdims=True)), 1e-12)
    C = weight_pt.shape[0] // k
    cosine = jnp.max(jnp.dot(x, w.T).reshape(-1, C, k), axis=2)
    if not training:
        return cosine
    ms = jnp.take(margins.astype(jnp.float32), labels)[:, None]
    cos_m = jnp.cos(ms)
    sin_m = jnp.sin(ms)
    th = -cos_m
    mm = sin_m * ms
    onehot = jax.nn.one_hot(labels, C, dtype=jnp.float32)
    sine = jnp.sqrt(jnp.clip(1.0 - cosine * cosine, 0.0, 1.0))
    phi = cosine * cos_m - sine * sin_m
    phi = jnp.where(cosine > th, phi, cosine - mm)
    return (onehot * phi + (1.0 - onehot) * cosine) * s


if __name__ == "__main__":
    # Small, module-consistent shapes; tile sizes chosen so the demo exercises
    # a real multi-tile (C tiles x B tiles) grid.
    B, D, C, K = 16, 64, 256, 3
    S = 30.0

    key = jax.random.PRNGKey(0)
    k_feat, k_w, k_lab = jax.random.split(key, 3)

    features = jax.random.normal(k_feat, (B, D), dtype=jnp.float32)
    stdv = 1.0 / math.sqrt(D)
    weight_pt = jax.random.uniform(k_w, (C * K, D), dtype=jnp.float32,
                                   minval=-stdv, maxval=stdv)
    labels = jax.random.randint(k_lab, (B,), 0, C, dtype=jnp.int32)
    margins = jnp.linspace(0.2, 0.5, C, dtype=jnp.float32)

    common = dict(k=K, s=S, tb=8, tn=128)

    # Default (bf16 weight streaming) path.
    out_train = arcface_subcenter_forward(features, weight_pt, labels, margins,
                                          training=True, **common)
    out_eval = arcface_subcenter_forward(features, weight_pt, labels, margins,
                                         training=False, **common)
    jax.block_until_ready((out_train, out_eval))
    assert out_train.shape == (B, C) and out_eval.shape == (B, C)
    assert bool(jnp.all(jnp.isfinite(out_train))) and bool(jnp.all(jnp.isfinite(out_eval)))

    # Tight numerical check of the kernel logic using the f32 compute path
    # (the bf16 default trades a little precision for ~2x HBM bandwidth).
    out_train_f32 = arcface_subcenter_forward(features, weight_pt, labels, margins,
                                              training=True,
                                              compute_dtype=jnp.float32, **common)
    out_eval_f32 = arcface_subcenter_forward(features, weight_pt, labels, margins,
                                             training=False,
                                             compute_dtype=jnp.float32, **common)
    ref_train = _reference_forward(features, weight_pt, labels, margins,
                                   k=K, s=S, training=True)
    ref_eval = _reference_forward(features, weight_pt, labels, margins,
                                  k=K, s=S, training=False)
    jax.block_until_ready((out_train_f32, out_eval_f32))
    assert jnp.allclose(out_train_f32, ref_train, atol=1e-4, rtol=1e-4)
    assert jnp.allclose(out_eval_f32, ref_eval, atol=1e-5, rtol=1e-5)

    print("KERNEL_OK")
</pallas_src>

<mosaic_0001>
module attributes {stable_mosaic.version = 11 : i64} {
  func.func @_arcface_kernel(%arg0: i32, %arg1: i32, %arg2: memref<8x128xbf16, #tpu.memory_space<vmem>>, %arg3: memref<3x128x128xbf16, #tpu.memory_space<vmem>>, %arg4: memref<8x1xi32, #tpu.memory_space<vmem>>, %arg5: memref<8x1xf32, #tpu.memory_space<vmem>>, %arg6: memref<8x128xf32, #tpu.memory_space<vmem>>) attributes {dimension_semantics = [#tpu.dimension_semantics<parallel>, #tpu.dimension_semantics<parallel>], iteration_bounds = array<i64: 2, 2>, scalar_prefetch = 0 : i64, scratch_operands = 0 : i64, tpu.core_type = #tpu.core_type<tc>, window_params = [{transform_indices = @transform_0, window_bounds = array<i64: 8, 128>}, {transform_indices = @transform_1, window_bounds = array<i64: 3, 128, 128>}, {transform_indices = @transform_2, window_bounds = array<i64: 8, 1>}, {transform_indices = @transform_3, window_bounds = array<i64: 8, 1>}, {transform_indices = @transform_4, window_bounds = array<i64: 8, 128>}]} {
    %c0 = arith.constant 0 : index
    %c0_0 = arith.constant 0 : index
    %0 = vector.load %arg2[%c0, %c0_0] : memref<8x128xbf16, #tpu.memory_space<vmem>>, vector<8x128xbf16>
    %c0_1 = arith.constant 0 : index
    %c0_2 = arith.constant 0 : index
    %c0_3 = arith.constant 0 : index
    %1 = vector.load %arg3[%c0_1, %c0_2, %c0_3] : memref<3x128x128xbf16, #tpu.memory_space<vmem>>, vector<1x128x128xbf16>
    %2 = vector.shape_cast %1 : vector<1x128x128xbf16> to vector<128x128xbf16>
    %cst = arith.constant dense<0.000000e+00> : vector<8x128xf32>
    %3 = tpu.matmul %0, %2, %cst {dimension_numbers = #tpu.dot_dimension_numbers<[1], [0], [0], [1], [0, 0, 1, 1], [], []>} : vector<8x128xbf16>, vector<128x128xbf16>, vector<8x128xf32> -> vector<8x128xf32>
    %c1 = arith.constant 1 : index
    %c0_4 = arith.constant 0 : index
    %c0_5 = arith.constant 0 : index
    %4 = vector.load %arg3[%c1, %c0_4, %c0_5] : memref<3x128x128xbf16, #tpu.memory_space<vmem>>, vector<1x128x128xbf16>
    %5 = vector.shape_cast %4 : vector<1x128x128xbf16> to vector<128x128xbf16>
    %cst_6 = arith.constant dense<0.000000e+00> : vector<8x128xf32>
    %6 = tpu.matmul %0, %5, %cst_6 {dimension_numbers = #tpu.dot_dimension_numbers<[1], [0], [0], [1], [0, 0, 1, 1], [], []>} : vector<8x128xbf16>, vector<128x128xbf16>, vector<8x128xf32> -> vector<8x128xf32>
    %7 = arith.maximumf %3, %6 : vector<8x128xf32>
    %c2 = arith.constant 2 : index
    %c0_7 = arith.constant 0 : index
    %c0_8 = arith.constant 0 : index
    %8 = vector.load %arg3[%c2, %c0_7, %c0_8] : memref<3x128x128xbf16, #tpu.memory_space<vmem>>, vector<1x128x128xbf16>
    %9 = vector.shape_cast %8 : vector<1x128x128xbf16> to vector<128x128xbf16>
    %cst_9 = arith.constant dense<0.000000e+00> : vector<8x128xf32>
    %10 = tpu.matmul %0, %9, %cst_9 {dimension_numbers = #tpu.dot_dimension_numbers<[1], [0], [0], [1], [0, 0, 1, 1], [], []>} : vector<8x128xbf16>, vector<128x128xbf16>, vector<8x128xf32> -> vector<8x128xf32>
    %11 = arith.maximumf %7, %10 : vector<8x128xf32>
    %c0_10 = arith.constant 0 : index
    %c0_11 = arith.constant 0 : index
    %12 = vector.load %arg4[%c0_10, %c0_11] : memref<8x1xi32, #tpu.memory_space<vmem>>, vector<8x1xi32>
    %c128_i32 = arith.constant 128 : i32
    %13 = arith.muli %arg0, %c128_i32 : i32
    %14 = tpu.iota {dimensions = array<i32: 1>} : vector<8x128xi32>
    %15 = vector.broadcast %13 : i32 to vector<8x128xi32>
    %16 = arith.addi %15, %14 : vector<8x128xi32>
    %17 = vector.broadcast %12 : vector<8x1xi32> to vector<8x128xi32>
    %18 = arith.cmpi eq, %16, %17 : vector<8x128xi32>
    %cst_12 = arith.constant 0.000000e+00 : f32
    %19 = vector.broadcast %cst_12 : f32 to vector<8x128xf32>
    %20 = arith.select %18, %11, %19 : vector<8x128xi1>, vector<8x128xf32>
    %cst_13 = arith.constant dense<0.000000e+00> : vector<8xf32>
    %21 = vector.multi_reduction <add>, %20, %cst_13 [1] : vector<8x128xf32> to vector<8xf32>
    %22 = vector.shape_cast %21 : vector<8xf32> to vector<8x1xf32>
    %c0_14 = arith.constant 0 : index
    %c0_15 = arith.constant 0 : index
    %23 = vector.load %arg5[%c0_14, %c0_15] : memref<8x1xf32, #tpu.memory_space<vmem>>, vector<8x1xf32>
    %24 = math.cos %23 : vector<8x1xf32>
    %25 = math.sin %23 : vector<8x1xf32>
    %cst_16 = arith.constant 0.000000e+00 : f32
    %26 = vector.broadcast %cst_16 : f32 to vector<8x1xf32>
    %27 = arith.subf %26, %24 : vector<8x1xf32>
    %28 = arith.mulf %25, %23 : vector<8x1xf32>
    %29 = arith.mulf %22, %22 : vector<8x1xf32>
    %cst_17 = arith.constant 1.000000e+00 : f32
    %30 = vector.broadcast %cst_17 : f32 to vector<8x1xf32>
    %31 = arith.subf %30, %29 : vector<8x1xf32>
    %cst_18 = arith.constant 0.000000e+00 : f32
    %cst_19 = arith.constant 1.000000e+00 : f32
    %32 = vector.broadcast %cst_18 : f32 to vector<8x1xf32>
    %33 = arith.maximumf %32, %31 : vector<8x1xf32>
    %34 = vector.broadcast %cst_19 : f32 to vector<8x1xf32>
    %35 = arith.minimumf %34, %33 : vector<8x1xf32>
    %36 = math.sqrt %35 : vector<8x1xf32>
    %37 = arith.mulf %22, %24 : vector<8x1xf32>
    %38 = arith.mulf %36, %25 : vector<8x1xf32>
    %39 = arith.subf %37, %38 : vector<8x1xf32>
    %40 = arith.cmpf ogt, %22, %27 : vector<8x1xf32>
    %41 = arith.subf %22, %28 : vector<8x1xf32>
    %42 = arith.select %40, %39, %41 : vector<8x1xi1>, vector<8x1xf32>
    %43 = vector.shape_cast %42 : vector<8x1xf32> to vector<8x1xf32>
    %44 = vector.broadcast %43 : vector<8x1xf32> to vector<8x128xf32>
    %45 = arith.select %18, %44, %11 : vector<8x128xi1>, vector<8x128xf32>
    %cst_20 = arith.constant 3.000000e+01 : f32
    %46 = vector.broadcast %cst_20 : f32 to vector<8x128xf32>
    %47 = arith.mulf %45, %46 : vector<8x128xf32>
    %c0_21 = arith.constant 0 : index
    %c0_22 = arith.constant 0 : index
    %48 = vector.load %arg6[%c0_21, %c0_22] : memref<8x128xf32, #tpu.memory_space<vmem>>, vector<8x128xf32>
    tpu.vector_store %arg6[%c0_21, %c0_22], %47 {strides = array<i32>} : memref<8x128xf32, #tpu.memory_space<vmem>>, vector<8x128xf32>,
    return
  }
  func.func @transform_0(%arg0: i32, %arg1: i32) -> (i32, i32) {
    %c0_i32 = arith.constant 0 : i32
    %c0_i32_0 = arith.constant 0 : i32
    return %arg1, %c0_i32 : i32, i32
  }
  func.func @transform_1(%arg0: i32, %arg1: i32) -> (i32, i32, i32) {
    %c0_i32 = arith.constant 0 : i32
    %c0_i32_0 = arith.constant 0 : i32
    %c0_i32_1 = arith.constant 0 : i32
    return %c0_i32, %c0_i32_0, %arg0 : i32, i32, i32
  }
  func.func @transform_2(%arg0: i32, %arg1: i32) -> (i32, i32) {
    %c0_i32 = arith.constant 0 : i32
    %c0_i32_0 = arith.constant 0 : i32
    return %arg1, %c0_i32 : i32, i32
  }
  func.func @transform_3(%arg0: i32, %arg1: i32) -> (i32, i32) {
    %c0_i32 = arith.constant 0 : i32
    %c0_i32_0 = arith.constant 0 : i32
    return %arg1, %c0_i32 : i32, i32
  }
  func.func @transform_4(%arg0: i32, %arg1: i32) -> (i32, i32) {
    %c0_i32 = arith.constant 0 : i32
    return %arg1, %arg0 : i32, i32
  }
}

</mosaic_0001>

<llo_original>
// kernel: tpu_custom_call.1
$region0: #{tpu_custom_call.1}
  #allocation0 [shape = 'u32[]', space=smem, size = 0x4, offset = 0x4, fixed_abs, tag = 'smem constant byte address 0x4 - core index']
  #allocation1 [shape = 'u32[144,128]{1,0:T(1,128)}', space=vmem, size = 0x12000, scoped, tag = 'internal scratch']
  %s0 = inlined_call_operand.vmem [shape: bf16[16,128], index: 0, kind: input, shape index: {}]
  %s1 = inlined_call_operand.hbm [shape: bf16[3,128,256], index: 1, kind: input, shape index: {}]
  %s2 = inlined_call_operand.vmem [shape: s32[16,1], index: 2, kind: input, shape index: {}]
  %s3 = inlined_call_operand.vmem [shape: f32[16,1], index: 3, kind: input, shape index: {}]
  %s4 = inlined_call_operand.hbm [shape: f32[16,256], index: 4, kind: output, shape index: {}]
  %s5 = sld [smem:[#allocation0]]
  $region53: #{tpu_custom_call.1} parent=0
    _
  %s7 = ssub.s32 1, %s5
  %s8 = scalar_select 0, %s7, %s5
  $region1: #{tpu_custom_call.1} parent=0
    #allocation2 [shape = 'u8[196608]{0}', space=vmem, size = 0x30000, scoped, tag = 'input window, operand 1']
    #allocation3 [shape = 's32[2]{0}', space=sflag, size = 0x8, scoped, tag = 'scoped memory for tpu_custom_call.1']
    #allocation4 [shape = 's32[2]{0}', space=sflag, size = 0x8, scoped, tag = 'scoped memory for tpu_custom_call.1']
    #allocation5 [shape = 'u8[8192]{0}', space=vmem, size = 0x2000, scoped, tag = 'output window, operand 0']
    %9 = vsyncpa [#allocation3], 0
    %s10 = scalar_lea.sflag [#allocation3], 1
    %11 = vsyncpa %s10, 0
    %12 = vsyncpa [#allocation4], 0
    %s13 = scalar_lea.sflag [#allocation4], 1
    %14 = vsyncpa %s13, 0
    loop: start=0, step=1, limit=6
    $region2: #{tpu_custom_call.1} parent=1 // loop_pre_header
      _
    $region3: #{tpu_custom_call.1} parent=1 // loop_header
      %s16 = sphi 0, %s20
      %p17 = scmp.ge.s32.totalorder %s16, 6
      %s23 = sphi 0, %s35
      %s24 = sphi 0, %s31
      %s25 = sphi 0, %s23
      %s26 = sphi 0, %s24
      %s27 = sphi 0, %s25
      %s28 = sphi 0, %s26
      %s38 = sphi 0, %s40
      %s41 = sphi 0, %s38
      %s42 = sphi 0, %s41
      %s58 = sphi 0, %s42
      %s64 = sphi 0, %s66
      %s67 = sphi 0, %s64
      %s68 = sphi 0, %s67
      %s84 = sphi 0, %s68
      %s90 = sphi 0, %s92
      %s93 = sphi 0, %s90
      %s94 = sphi 0, %s93
      %s110 = sphi 0, %s94
      %s116 = sphi 0, %s118
      %s119 = sphi 0, %s116
      %s120 = sphi 0, %s119
      %s136 = sphi 0, %s120
      %s144 = sphi 0, %s146
      %s147 = sphi 0, %s144
      %s148 = sphi 0, %s147
      %s164 = sphi 0, %s148
    $region4: #{tpu_custom_call.1} parent=1 // loop_header_branch
      %19 = sbr.rel (%p17) target = $region8
    $region5: #{tpu_custom_call.1} parent=1 // loop_body
      %s21 = ssub.s32 %s16, 1
      %s22 = ssub.s32 %s16, 2
      %s29 = sadd.s32 1, %s24
      %p30 = scmp.ge.s32.totalorder %s29, 2
      %s31 = scalar_select %p30, 0, %s29
      %s32 = sadd.s32 1, %s23
      %s33 = scalar_select %p30, %s32, %s23
      %p34 = scmp.ge.s32.totalorder %s33, 2
      %s35 = scalar_select %p34, 0, %s33
      %s36 = ssub.s32 %s24, %s31
      %p37 = scmp.eq.s32.totalorder %s36, 0
      %s39 = sadd.s32 %s38, 1
      %s40 = scalar_select %p37, %s38, %s39
      %p43 = pneg %p37
      %p44 = scmp.eq.s32.totalorder %s16, 3
      %p45 = por %p43, %p44
      %p46 = scmp.ne.s32.totalorder %s38, %s41
      %p47 = scmp.eq.s32.totalorder %s16, 0
      %p48 = por %p46, %p47
      %p49 = scmp.ne.s32.totalorder %s38, %s41
      %p50 = scmp.eq.s32.totalorder %s21, 3
      %p51 = por %p49, %p50
      %p52 = scmp.ne.s32.totalorder %s41, %s42
      %p53 = scmp.eq.s32.totalorder %s21, 0
      %p54 = por %p52, %p53
      %p55 = scmp.ne.s32.totalorder %s41, %s42
      %p56 = scmp.eq.s32.totalorder %s22, 3
      %p57 = por %p55, %p56
      %p59 = scmp.ne.s32.totalorder %s42, %s58
      %p60 = scmp.eq.s32.totalorder %s22, 0
      %p61 = por %p59, %p60
      %s62 = ssub.s32 %s23, %s35
      %p63 = scmp.eq.s32.totalorder %s62, 0
      %s65 = sadd.s32 %s64, 1
      %s66 = scalar_select %p63, %s64, %s65
      %p69 = pneg %p63
      %p70 = scmp.eq.s32.totalorder %s16, 3
      %p71 = por %p69, %p70
      %p72 = scmp.ne.s32.totalorder %s64, %s67
      %p73 = scmp.eq.s32.totalorder %s16, 0
      %p74 = por %p72, %p73
      %p75 = scmp.ne.s32.totalorder %s64, %s67
      %p76 = scmp.eq.s32.totalorder %s21, 3
      %p77 = por %p75, %p76
      %p78 = scmp.ne.s32.totalorder %s67, %s68
      %p79 = scmp.eq.s32.totalorder %s21, 0
      %p80 = por %p78, %p79
      %p81 = scmp.ne.s32.totalorder %s67, %s68
      %p82 = scmp.eq.s32.totalorder %s22, 3
      %p83 = por %p81, %p82
      %p85 = scmp.ne.s32.totalorder %s68, %s84
      %p86 = scmp.eq.s32.totalorder %s22, 0
      %p87 = por %p85, %p86
      %s88 = ssub.s32 %s24, %s31
      %p89 = scmp.eq.s32.totalorder %s88, 0
      %s91 = sadd.s32 %s90, 1
      %s92 = scalar_select %p89, %s90, %s91
      %p95 = pneg %p89
      %p96 = scmp.eq.s32.totalorder %s16, 3
      %p97 = por %p95, %p96
      %p98 = scmp.ne.s32.totalorder %s90, %s93
      %p99 = scmp.eq.s32.totalorder %s16, 0
      %p100 = por %p98, %p99
      %p101 = scmp.ne.s32.totalorder %s90, %s93
      %p102 = scmp.eq.s32.totalorder %s21, 3
      %p103 = por %p101, %p102
      %p104 = scmp.ne.s32.totalorder %s93, %s94
      %p105 = scmp.eq.s32.totalorder %s21, 0
      %p106 = por %p104, %p105
      %p107 = scmp.ne.s32.totalorder %s93, %s94
      %p108 = scmp.eq.s32.totalorder %s22, 3
      %p109 = por %p107, %p108
      %p111 = scmp.ne.s32.totalorder %s94, %s110
      %p112 = scmp.eq.s32.totalorder %s22, 0
      %p113 = por %p111, %p112
      %s114 = ssub.s32 %s24, %s31
      %p115 = scmp.eq.s32.totalorder %s114, 0
      %s117 = sadd.s32 %s116, 1
      %s118 = scalar_select %p115, %s116, %s117
      %p121 = pneg %p115
      %p122 = scmp.eq.s32.totalorder %s16, 3
      %p123 = por %p121, %p122
      %p124 = scmp.ne.s32.totalorder %s116, %s119
      %p125 = scmp.eq.s32.totalorder %s16, 0
      %p126 = por %p124, %p125
      %p127 = scmp.ne.s32.totalorder %s116, %s119
      %p128 = scmp.eq.s32.totalorder %s21, 3
      %p129 = por %p127, %p128
      %p130 = scmp.ne.s32.totalorder %s119, %s120
      %p131 = scmp.eq.s32.totalorder %s21, 0
      %p132 = por %p130, %p131
      %p133 = scmp.ne.s32.totalorder %s119, %s120
      %p134 = scmp.eq.s32.totalorder %s22, 3
      %p135 = por %p133, %p134
      %p137 = scmp.ne.s32.totalorder %s120, %s136
      %p138 = scmp.eq.s32.totalorder %s22, 0
      %p139 = por %p137, %p138
      %s140 = ssub.s32 %s24, %s31
      %s141 = ssub.s32 %s23, %s35
      %s142 = sor.u32 %s140, %s141
      %p143 = scmp.eq.s32.totalorder %s142, 0
      %s145 = sadd.s32 %s144, 1
      %s146 = scalar_select %p143, %s144, %s145
      %p149 = pneg %p143
      %p150 = scmp.eq.s32.totalorder %s16, 3
      %p151 = por %p149, %p150
      %p152 = scmp.ne.s32.totalorder %s144, %s147
      %p153 = scmp.eq.s32.totalorder %s16, 0
      %p154 = por %p152, %p153
      %p155 = scmp.ne.s32.totalorder %s144, %s147
      %p156 = scmp.eq.s32.totalorder %s21, 3
      %p157 = por %p155, %p156
      %p158 = scmp.ne.s32.totalorder %s147, %s148
      %p159 = scmp.eq.s32.totalorder %s21, 0
      %p160 = por %p158, %p159
      %p161 = scmp.ne.s32.totalorder %s147, %s148
      %p162 = scmp.eq.s32.totalorder %s22, 3
      %p163 = por %p161, %p162
      %p165 = scmp.ne.s32.totalorder %s148, %s164
      %p166 = scmp.eq.s32.totalorder %s22, 0
      %p167 = por %p165, %p166
      %p168 = scmp.le.s32.totalorder 1, %s16
      %p169 = scmp.lt.s32.totalorder %s16, 5
      %p170 = pnand %p168, %p169
      %p171 = pneg %p170
      // Predicated region
      $region9: #{tpu_custom_call.1} parent=5 // pred_check
        _
      $region10: #{tpu_custom_call.1} parent=5 // pred_check_branch
        %173 = sbr.rel (%p170) target = $region12
      $region11: #{tpu_custom_call.1} parent=5 // pred_region
        %s174 = ssub.s32 %s16, 1
      $region12: #{tpu_custom_call.1} parent=5 // pred_fallthru
        _
      %p175 = scmp.lt.s32.totalorder %s16, 4
      // Predicated region
      $region13: #{tpu_custom_call.1} parent=5 // pred_check
        %p176 = pneg %p175
      $region14: #{tpu_custom_call.1} parent=5 // pred_check_branch
        %178 = sbr.rel (%p176) target = $region16
      $region15: #{tpu_custom_call.1} parent=5 // pred_region
        // Predicated region
        $region17: #{tpu_custom_call.1} parent=15 // pred_check
          %p179 = pneg %p48
        $region18: #{tpu_custom_call.1} parent=15 // pred_check_branch
          %181 = sbr.rel (%p179) target = $region20
        $region19: #{tpu_custom_call.1} parent=15 // pred_region
          %p182 = scmp.lt.s32.totalorder %s24, 1
          %s183 = scalar_select %p182, %s24, 1
          %s184 = smul.addr %s183, 4
          %s185 = scalar_lea.vmem %s0, %s184
        $region20: #{tpu_custom_call.1} parent=15 // pred_fallthru
          _
        // Predicated region
        $region21: #{tpu_custom_call.1} parent=15 // pred_check
          %p186 = pneg %p74
        $region22: #{tpu_custom_call.1} parent=15 // pred_check_branch
          %188 = sbr.rel (%p186) target = $region24
        $region23: #{tpu_custom_call.1} parent=15 // pred_region
          %s189 = sand.u32 %s64, 1
          %s190 = scalar_lea.sflag [#allocation3], %s189
          %s191 = sand.u32 %s64, 1
          %s192 = smul.addr %s191, 192
          %s193 = scalar_lea.vmem [#allocation2], %s192
          %s195 = ssub.s32 3072, 3072
          %196 = vsyncadd %s190, %s195
          %s197 = smul.addr %s23, 64
          %s198 = scalar_lea.hbm %s1, %s197
          %s199 = sshll.u32 %s193, 4
          %s200 = int_to_ptr.vmem [resolvable:$true] %s199
          %205 = dma.hbm_to_vmem [thread:$0]  %s198, 3072, %s200, %s190, 128, 64, 4
        $region24: #{tpu_custom_call.1} parent=15 // pred_fallthru
          _
        // Predicated region
        $region25: #{tpu_custom_call.1} parent=15 // pred_check
          %p206 = pneg %p100
        $region26: #{tpu_custom_call.1} parent=15 // pred_check_branch
          %208 = sbr.rel (%p206) target = $region28
        $region27: #{tpu_custom_call.1} parent=15 // pred_region
          %p209 = scmp.lt.s32.totalorder %s24, 1
          %s210 = scalar_select %p209, %s24, 1
          %s211 = smul.addr %s210, 8
          %s212 = scalar_lea.vmem %s2, %s211
        $region28: #{tpu_custom_call.1} parent=15 // pred_fallthru
          _
        // Predicated region
        $region29: #{tpu_custom_call.1} parent=15 // pred_check
          %p213 = pneg %p126
        $region30: #{tpu_custom_call.1} parent=15 // pred_check_branch
          %215 = sbr.rel (%p213) target = $region32
        $region31: #{tpu_custom_call.1} parent=15 // pred_region
          %p216 = scmp.lt.s32.totalorder %s24, 1
          %s217 = scalar_select %p216, %s24, 1
          %s218 = smul.addr %s217, 8
          %s219 = scalar_lea.vmem %s3, %s218
        $region32: #{tpu_custom_call.1} parent=15 // pred_fallthru
          _
      $region16: #{tpu_custom_call.1} parent=5 // pred_fallthru
        _
      %p220 = scmp.le.s32.totalorder 1, %s16
      %p221 = scmp.lt.s32.totalorder %s16, 5
      %p222 = pnand %p220, %p221
      %p223 = pneg %p222
      // Predicated region
      $region33: #{tpu_custom_call.1} parent=5 // pred_check
        _
      $region34: #{tpu_custom_call.1} parent=5 // pred_check_branch
        %225 = sbr.rel (%p222) target = $region36
      $region35: #{tpu_custom_call.1} parent=5 // pred_region
        %s226 = ssub.s32 %s16, 1
        %s227 = sand.u32 %s67, 1
        %s228 = scalar_lea.sflag [#allocation3], %s227
        %s229 = sand.u32 %s67, 1
        %s230 = smul.addr %s229, 192
        %s231 = scalar_lea.vmem [#allocation2], %s230
        // Predicated region
        $region37: #{tpu_custom_call.1} parent=35 // pred_check
          %p232 = pneg %p80
        $region38: #{tpu_custom_call.1} parent=35 // pred_check_branch
          %234 = sbr.rel (%p232) target = $region40
        $region39: #{tpu_custom_call.1} parent=35 // pred_region
          %235 = dma.done %s228, 3072
        $region40: #{tpu_custom_call.1} parent=35 // pred_fallthru
          _
        %p236 = scmp.lt.s32.totalorder %s26, 1
        %s237 = scalar_select %p236, %s26, 1
        %s238 = smul.addr %s237, 4
        %s239 = scalar_lea.vmem %s0, %s238
        %p240 = pneg %p54
        %p241 = pneg %p51
        %s242 = sand.u32 %s67, 1
        %s243 = scalar_lea.sflag [#allocation3], %s242
        %s244 = sand.u32 %s67, 1
        %s245 = smul.addr %s244, 192
        %s246 = scalar_lea.vmem [#allocation2], %s245
        %p247 = pneg %p80
        %p248 = pneg %p77
        %p249 = scmp.lt.s32.totalorder %s26, 1
        %s250 = scalar_select %p249, %s26, 1
        %s251 = smul.addr %s250, 8
        %s252 = scalar_lea.vmem %s2, %s251
        %p253 = pneg %p106
        %p254 = pneg %p103
        %p255 = scmp.lt.s32.totalorder %s26, 1
        %s256 = scalar_select %p255, %s26, 1
        %s257 = smul.addr %s256, 8
        %s258 = scalar_lea.vmem %s3, %s257
        %p259 = pneg %p132
        %p260 = pneg %p129
        %p261 = pneg %p160
        %p262 = pneg %p157
        %s263 = sand.u32 %s147, 1
        %s264 = scalar_lea.sflag [#allocation4], %s263
        %s265 = sand.u32 %s147, 1
        %s266 = smul.addr %s265, 8
        %s267 = scalar_lea.vmem [#allocation5], %s266
        %p268 = scmp.lt.s32.totalorder %s26, 1
        %s269 = scalar_select %p268, %s26, 1
        %s270 = smul.addr %s269, 4
        %s271 = scalar_lea.vmem %s0, %s270
        %p272 = scmp.lt.s32.totalorder %s26, 1
        %s273 = scalar_select %p272, %s26, 1
        %s274 = smul.addr %s273, 8
        %s275 = scalar_lea.vmem %s2, %s274
        %p276 = scmp.lt.s32.totalorder %s26, 1
        %s277 = scalar_select %p276, %s26, 1
        %s278 = smul.addr %s277, 8
        %s279 = scalar_lea.vmem %s3, %s278
        %v281 = vld [vmem:[%s271] sm:$0xf]
        %v282 = vld [vmem:[%s231] sm:$0xf]
        %v283 = vld [vmem:[%s231 + $0x4] sm:$0xf]
        %v284 = vld [vmem:[%s231 + $0x8] sm:$0xf]
        %v285 = vld [vmem:[%s231 + $0xc] sm:$0xf]
        %v286 = vld [vmem:[%s231 + $0x10] sm:$0xf]
        %v287 = vld [vmem:[%s231 + $0x14] sm:$0xf]
        %v288 = vld [vmem:[%s231 + $0x18] sm:$0xf]
        %v289 = vld [vmem:[%s231 + $0x1c] sm:$0xf]
        %v290 = vld [vmem:[%s231 + $0x20] sm:$0xf]
        %v291 = vld [vmem:[%s231 + $0x24] sm:$0xf]
        %v292 = vld [vmem:[%s231 + $0x28] sm:$0xf]
        %v293 = vld [vmem:[%s231 + $0x2c] sm:$0xf]
        %v294 = vld [vmem:[%s231 + $0x30] sm:$0xf]
        %v295 = vld [vmem:[%s231 + $0x34] sm:$0xf]
        %v296 = vld [vmem:[%s231 + $0x38] sm:$0xf]
        %v297 = vld [vmem:[%s231 + $0x3c] sm:$0xf]
        %v314 = vunpack.c.l.b16 %v282
        %v315 = vunpack.c.l.b16 %v283
        %v316 = vunpack.c.l.b16 %v284
        %v317 = vunpack.c.l.b16 %v285
        %v318 = vunpack.c.l.b16 %v286
        %v319 = vunpack.c.l.b16 %v287
        %v320 = vunpack.c.l.b16 %v288
        %v321 = vunpack.c.l.b16 %v289
        %v322 = vunpack.c.l.b16 %v290
        %v323 = vunpack.c.l.b16 %v291
        %v324 = vunpack.c.l.b16 %v292
        %v325 = vunpack.c.l.b16 %v293
        %v326 = vunpack.c.l.b16 %v294
        %v327 = vunpack.c.l.b16 %v295
        %v328 = vunpack.c.l.b16 %v296
        %v329 = vunpack.c.l.b16 %v297
        %v330 = vpack.c.b16 %v315, %v314
        %v331 = vpack.c.b16 %v317, %v316
        %v332 = vpack.c.b16 %v319, %v318
        %v333 = vpack.c.b16 %v321, %v320
        %v334 = vpack.c.b16 %v323, %v322
        %v335 = vpack.c.b16 %v325, %v324
        %v336 = vpack.c.b16 %v327, %v326
        %v337 = vpack.c.b16 %v329, %v328
        %346 = vmatprep.subr.bf16.mxu0 0
        %347 = vmatpush1.bf16.msra.mxu0 %v337
        %348 = vmatprep.subr.bf16.mxu0 0
        %349 = vmatpush1.bf16.msra.mxu0 %v336
        %350 = vmatprep.subr.bf16.mxu0 0
        %351 = vmatpush1.bf16.msra.mxu0 %v335
        %352 = vmatprep.subr.bf16.mxu0 0
        %353 = vmatpush1.bf16.msra.mxu0 %v334
        %354 = vmatprep.subr.bf16.mxu0 0
        %355 = vmatpush1.bf16.msra.mxu0 %v333
        %356 = vmatprep.subr.bf16.mxu0 0
        %357 = vmatpush1.bf16.msra.mxu0 %v332
        %358 = vmatprep.subr.bf16.mxu0 0
        %359 = vmatpush1.bf16.msra.mxu0 %v331
        %360 = vmatprep.subr.bf16.mxu0 0
        %361 = vmatpush1.bf16.msra.mxu0 %v330
        %362 = vmatprep.subr.bf16.mxu0 0
        %363 = vmatpush2.bf16.msra.mxu0 0
        %364 = vmatprep.subr.bf16.mxu0 0
        %365 = vmatpush2.bf16.msra.mxu0 0
        %366 = vmatprep.subr.bf16.mxu0 0
        %367 = vmatpush2.bf16.msra.mxu0 0
        %368 = vmatprep.subr.bf16.mxu0 0
        %369 = vmatpush2.bf16.msra.mxu0 0
        %370 = vmatprep.subr.bf16.mxu0 0
        %371 = vmatpush2.bf16.msra.mxu0 0
        %372 = vmatprep.subr.bf16.mxu0 0
        %373 = vmatpush2.bf16.msra.mxu0 0
        %374 = vmatprep.subr.bf16.mxu0 0
        %375 = vmatpush2.bf16.msra.mxu0 0
        %376 = vmatprep.subr.bf16.mxu0 0
        %377 = vmatpush2.bf16.msra.mxu0 0
        %378 = vmatprep.mubr.bf16.mxu0 0
        %379 = vmatmul.mubr.bf16.gmra.mxu0 %v281
        %v380 = vpop.f32.mrf.mxu0
        %v381 = vadd.f32 0.0, %v380
        %v382 = vpop.f32.mrf.mxu0
        %v383 = vpop.f32.mrf.mxu0
        %v384 = vpop.f32.mrf.mxu0
        %385 = vdwg.mxu0
        %s386 = scalar_lea.vmem %s231, 64 [#allocation2]
        %v387 = vld [vmem:[%s386] sm:$0xf]
        %v388 = vld [vmem:[%s386 + $0x4] sm:$0xf]
        %v389 = vld [vmem:[%s386 + $0x8] sm:$0xf]
        %v390 = vld [vmem:[%s386 + $0xc] sm:$0xf]
        %v391 = vld [vmem:[%s386 + $0x10] sm:$0xf]
        %v392 = vld [vmem:[%s386 + $0x14] sm:$0xf]
        %v393 = vld [vmem:[%s386 + $0x18] sm:$0xf]
        %v394 = vld [vmem:[%s386 + $0x1c] sm:$0xf]
        %v395 = vld [vmem:[%s386 + $0x20] sm:$0xf]
        %v396 = vld [vmem:[%s386 + $0x24] sm:$0xf]
        %v397 = vld [vmem:[%s386 + $0x28] sm:$0xf]
        %v398 = vld [vmem:[%s386 + $0x2c] sm:$0xf]
        %v399 = vld [vmem:[%s386 + $0x30] sm:$0xf]
        %v400 = vld [vmem:[%s386 + $0x34] sm:$0xf]
        %v401 = vld [vmem:[%s386 + $0x38] sm:$0xf]
        %v402 = vld [vmem:[%s386 + $0x3c] sm:$0xf]
        %v419 = vunpack.c.l.b16 %v387
        %v420 = vunpack.c.l.b16 %v388
        %v421 = vunpack.c.l.b16 %v389
        %v422 = vunpack.c.l.b16 %v390
        %v423 = vunpack.c.l.b16 %v391
        %v424 = vunpack.c.l.b16 %v392
        %v425 = vunpack.c.l.b16 %v393
        %v426 = vunpack.c.l.b16 %v394
        %v427 = vunpack.c.l.b16 %v395
        %v428 = vunpack.c.l.b16 %v396
        %v429 = vunpack.c.l.b16 %v397
        %v430 = vunpack.c.l.b16 %v398
        %v431 = vunpack.c.l.b16 %v399
        %v432 = vunpack.c.l.b16 %v400
        %v433 = vunpack.c.l.b16 %v401
        %v434 = vunpack.c.l.b16 %v402
        %v435 = vpack.c.b16 %v420, %v419
        %v436 = vpack.c.b16 %v422, %v421
        %v437 = vpack.c.b16 %v424, %v423
        %v438 = vpack.c.b16 %v426, %v425
        %v439 = vpack.c.b16 %v428, %v427
        %v440 = vpack.c.b16 %v430, %v429
        %v441 = vpack.c.b16 %v432, %v431
        %v442 = vpack.c.b16 %v434, %v433
        %451 = vmatprep.subr.bf16.mxu0 0
        %452 = vmatpush1.bf16.msra.mxu0 %v442
        %453 = vmatprep.subr.bf16.mxu0 0
        %454 = vmatpush1.bf16.msra.mxu0 %v441
        %455 = vmatprep.subr.bf16.mxu0 0
        %456 = vmatpush1.bf16.msra.mxu0 %v440
        %457 = vmatprep.subr.bf16.mxu0 0
        %458 = vmatpush1.bf16.msra.mxu0 %v439
        %459 = vmatprep.subr.bf16.mxu0 0
        %460 = vmatpush1.bf16.msra.mxu0 %v438
        %461 = vmatprep.subr.bf16.mxu0 0
        %462 = vmatpush1.bf16.msra.mxu0 %v437
        %463 = vmatprep.subr.bf16.mxu0 0
        %464 = vmatpush1.bf16.msra.mxu0 %v436
        %465 = vmatprep.subr.bf16.mxu0 0
        %466 = vmatpush1.bf16.msra.mxu0 %v435
        %467 = vmatprep.subr.bf16.mxu0 0
        %468 = vmatpush2.bf16.msra.mxu0 0
        %469 = vmatprep.subr.bf16.mxu0 0
        %470 = vmatpush2.bf16.msra.mxu0 0
        %471 = vmatprep.subr.bf16.mxu0 0
        %472 = vmatpush2.bf16.msra.mxu0 0
        %473 = vmatprep.subr.bf16.mxu0 0
        %474 = vmatpush2.bf16.msra.mxu0 0
        %475 = vmatprep.subr.bf16.mxu0 0
        %476 = vmatpush2.bf16.msra.mxu0 0
        %477 = vmatprep.subr.bf16.mxu0 0
        %478 = vmatpush2.bf16.msra.mxu0 0
        %479 = vmatprep.subr.bf16.mxu0 0
        %480 = vmatpush2.bf16.msra.mxu0 0
        %481 = vmatprep.subr.bf16.mxu0 0
        %482 = vmatpush2.bf16.msra.mxu0 0
        %483 = vmatprep.mubr.bf16.mxu0 0
        %484 = vmatmul.mubr.bf16.gmra.mxu0 %v281
        %v485 = vpop.f32.mrf.mxu0
        %v486 = vadd.f32 0.0, %v485
        %v487 = vpop.f32.mrf.mxu0
        %v488 = vpop.f32.mrf.mxu0
        %v489 = vpop.f32.mrf.mxu0
        %490 = vdwg.mxu0
        %v491 = vmax.f32 %v381, %v486
        %s492 = scalar_lea.vmem %s231, 128 [#allocation2]
        %v493 = vld [vmem:[%s492] sm:$0xf]
        %v494 = vld [vmem:[%s492 + $0x4] sm:$0xf]
        %v495 = vld [vmem:[%s492 + $0x8] sm:$0xf]
        %v496 = vld [vmem:[%s492 + $0xc] sm:$0xf]
        %v497 = vld [vmem:[%s492 + $0x10] sm:$0xf]
        %v498 = vld [vmem:[%s492 + $0x14] sm:$0xf]
        %v499 = vld [vmem:[%s492 + $0x18] sm:$0xf]
        %v500 = vld [vmem:[%s492 + $0x1c] sm:$0xf]
        %v501 = vld [vmem:[%s492 + $0x20] sm:$0xf]
        %v502 = vld [vmem:[%s492 + $0x24] sm:$0xf]
        %v503 = vld [vmem:[%s492 + $0x28] sm:$0xf]
        %v504 = vld [vmem:[%s492 + $0x2c] sm:$0xf]
        %v505 = vld [vmem:[%s492 + $0x30] sm:$0xf]
        %v506 = vld [vmem:[%s492 + $0x34] sm:$0xf]
        %v507 = vld [vmem:[%s492 + $0x38] sm:$0xf]
        %v508 = vld [vmem:[%s492 + $0x3c] sm:$0xf]
        %v525 = vunpack.c.l.b16 %v493
        %v526 = vunpack.c.l.b16 %v494
        %v527 = vunpack.c.l.b16 %v495
        %v528 = vunpack.c.l.b16 %v496
        %v529 = vunpack.c.l.b16 %v497
        %v530 = vunpack.c.l.b16 %v498
        %v531 = vunpack.c.l.b16 %v499
        %v532 = vunpack.c.l.b16 %v500
        %v533 = vunpack.c.l.b16 %v501
        %v534 = vunpack.c.l.b16 %v502
        %v535 = vunpack.c.l.b16 %v503
        %v536 = vunpack.c.l.b16 %v504
        %v537 = vunpack.c.l.b16 %v505
        %v538 = vunpack.c.l.b16 %v506
        %v539 = vunpack.c.l.b16 %v507
        %v540 = vunpack.c.l.b16 %v508
        %v541 = vpack.c.b16 %v526, %v525
        %v542 = vpack.c.b16 %v528, %v527
        %v543 = vpack.c.b16 %v530, %v529
        %v544 = vpack.c.b16 %v532, %v531
        %v545 = vpack.c.b16 %v534, %v533
        %v546 = vpack.c.b16 %v536, %v535
        %v547 = vpack.c.b16 %v538, %v537
        %v548 = vpack.c.b16 %v540, %v539
        %557 = vmatprep.subr.bf16.mxu0 0
        %558 = vmatpush1.bf16.msra.mxu0 %v548
        %559 = vmatprep.subr.bf16.mxu0 0
        %560 = vmatpush1.bf16.msra.mxu0 %v547
        %561 = vmatprep.subr.bf16.mxu0 0
        %562 = vmatpush1.bf16.msra.mxu0 %v546
        %563 = vmatprep.subr.bf16.mxu0 0
        %564 = vmatpush1.bf16.msra.mxu0 %v545
        %565 = vmatprep.subr.bf16.mxu0 0
        %566 = vmatpush1.bf16.msra.mxu0 %v544
        %567 = vmatprep.subr.bf16.mxu0 0
        %568 = vmatpush1.bf16.msra.mxu0 %v543
        %569 = vmatprep.subr.bf16.mxu0 0
        %570 = vmatpush1.bf16.msra.mxu0 %v542
        %571 = vmatprep.subr.bf16.mxu0 0
        %572 = vmatpush1.bf16.msra.mxu0 %v541
        %573 = vmatprep.subr.bf16.mxu0 0
        %574 = vmatpush2.bf16.msra.mxu0 0
        %575 = vmatprep.subr.bf16.mxu0 0
        %576 = vmatpush2.bf16.msra.mxu0 0
        %577 = vmatprep.subr.bf16.mxu0 0
        %578 = vmatpush2.bf16.msra.mxu0 0
        %579 = vmatprep.subr.bf16.mxu0 0
        %580 = vmatpush2.bf16.msra.mxu0 0
        %581 = vmatprep.subr.bf16.mxu0 0
        %582 = vmatpush2.bf16.msra.mxu0 0
        %583 = vmatprep.subr.bf16.mxu0 0
        %584 = vmatpush2.bf16.msra.mxu0 0
        %585 = vmatprep.subr.bf16.mxu0 0
        %586 = vmatpush2.bf16.msra.mxu0 0
        %587 = vmatprep.subr.bf16.mxu0 0
        %588 = vmatpush2.bf16.msra.mxu0 0
        %589 = vmatprep.mubr.bf16.mxu0 0
        %590 = vmatmul.mubr.bf16.gmra.mxu0 %v281
        %v591 = vpop.f32.mrf.mxu0
        %v592 = vadd.f32 0.0, %v591
        %v593 = vpop.f32.mrf.mxu0
        %v594 = vpop.f32.mrf.mxu0
        %v595 = vpop.f32.mrf.mxu0
        %596 = vdwg.mxu0
        %v597 = vmax.f32 %v491, %v592
        %v598 = vld [vmem:[%s275] sm:$0xff]
        %s599 = smul.u32 %s25, 128
        %v600 = vlaneseq
        %v601 = vand.u32 %v600, 127
        %v602 = vstv %s599
        %v603 = vadd.s32 %v602, %v601
        %604 = vset.pattern.permute.xlu0 0
        %605 = vperm.xlu0 %604, %v598
        %v606 = vpop.permute.xlu0 %605
        %vm607 = vcmp.eq.s32.totalorder %v603, %v606
        %v608 = vsel %vm607, %v597, 0.0
        %609 = vadd.xlane.f32.xlu0 %v608
        %v610 = vpop.xlane.xlu0 %609
        %v611 = vld [vmem:[%s279] sm:$0xff]
        %v612 = vand.u32 2147483647, %v611
        %vm613 = vcmp.le.f32.partialorder %v612, 0.7853982
        %vm614 = vcmp.lt.s32.totalorder %v611, 0
        %v615 = vand.u32 %v611, 2139095040
        %v616 = vshrl.u32 %v615, 23
        %v617 = vsub.s32 %v616, 127
        %v618 = vand.u32 2147483647, %v611
        %v619 = vand.u32 %v618, 8388607
        %v620 = vor.u32 %v619, 8388608
        %v621 = vsub.s32 0, %v620
        %v622 = vadd.s32 %v617, 1
        %vm623 = vcmp.gt.s32.totalorder %v622, 0
        %v624 = vsel %vm623, %v622, 0
        %v625 = vshrl.u32 %v624, 5
        %v626 = vand.u32 %v624, 31
        %v627 = vsub.s32 32, %v626
        %v628 = vshrl.u32 683565275, %v627
        %v629 = vshll.u32 683565275, %v626
        %v630 = vshrl.u32 2475754826, %v627
        %v631 = vor.u32 %v629, %v630
        %v632 = vshll.u32 2475754826, %v626
        %v633 = vshrl.u32 2131351028, %v627
        %v634 = vor.u32 %v632, %v633
        %v635 = vshll.u32 2131351028, %v626
        %v636 = vshrl.u32 2102212464, %v627
        %v637 = vor.u32 %v635, %v636
        %v638 = vshll.u32 2102212464, %v626
        %v639 = vshrl.u32 920167782, %v627
        %v640 = vor.u32 %v638, %v639
        %v641 = vshll.u32 920167782, %v626
        %v642 = vshrl.u32 1326507024, %v627
        %v643 = vor.u32 %v641, %v642
        %vm644 = vcmp.lt.s32.totalorder %v625, 1
        %vm645 = vcmp.lt.s32.totalorder %v625, 2
        %vm646 = vcmp.lt.s32.totalorder %v625, 3
        %vm647 = vcmp.lt.s32.totalorder %v625, 4
        %v648 = vsel %vm644, %v628, %v631
        %v649 = vsel %vm647, %v637, 2102212464
        %v650 = vsel %vm646, %v634, %v649
        %v651 = vsel %vm645, %v648, %v650
        %v652 = vsel %vm644, %v631, %v634
        %v653 = vsel %vm647, %v640, 920167782
        %v654 = vsel %vm646, %v637, %v653
        %v655 = vsel %vm645, %v652, %v654
        %v656 = vsel %vm644, %v634, %v637
        %v657 = vsel %vm647, %v643, 1326507024
        %v658 = vsel %vm646, %v640, %v657
        %v659 = vsel %vm645, %v656, %v658
        %v660 = vshll.u32 %v620, 8
        %v661 = vmul.u32.u64.compose %v660, %v659
        %v662 = vextract.low.u32 %v661
        %v663 = vextract.high.u32 %v661
        %v664 = vmul.u32.u64.compose %v660, %v655
        %v665 = vextract.low.u32 %v664
        %v666 = vextract.high.u32 %v664
        %v667 = vmul.u32 %v660, %v651
        %v668 = vadd.s32 %v663, %v665
        %vm669 = vc.u32 %v663, %v665
        %v670 = vadd.s32 %v666, 1
        %v671 = vsel %vm669, %v670, %v666
        %v672 = vadd.s32 %v667, %v671
        %v673 = vadd.s32 %v672, 536870912
        %v674 = vshrl.u32 %v673, 30
        %v675 = vshll.u32 %v674, 30
        %v676 = vsub.s32 %v672, %v675
        %vm677 = vcmp.lt.s32.totalorder %v676, 0
        %v678 = vsub.s32 0, %v676
        %v679 = vsel %vm677, %v678, %v676
        %v680 = vclz %v679
        %v681 = vsub.s32 %v680, 2
        %vm682 = vcmp.gt.s32.totalorder 0, %v681
        %v683 = vsel %vm682, 0, %v681
        %v684 = vsub.s32 32, %v683
        %v685 = vshll.u32 %v676, %v683
        %v686 = vshrl.u32 %v668, %v684
        %v687 = vor.u32 %v685, %v686
        %v688 = vsub.s32 4294967266, %v683
        %v689 = vadd.s32 %v688, 127
        %v690 = vshll.u32 %v689, 23
        %v691 = vor.u32 4788187, %v690
        %v692 = vand.u32 2147483647, %v691
        %v694 = vcvt.s32.f32 %v687
        %v695 = vmul.f32 %v694, %v692
        %v696 = vxor.u32 %v695, 2147483648
        %v697 = vsel %vm614, %v696, %v695
        %v698 = vsub.s32 4, %v674
        %v699 = vsel %vm614, %v698, %v674
        %v700 = vsel %vm613, %v611, %v697
        %v701 = vsel %vm613, 0, %v699
        %v702 = vcosq.f32.pop %v700
        %v703 = vsinq.f32.pop %v700
        %vm704 = vweird.f32 %v611
        %v705 = vand.u32 %v701, 3
        %vm706 = vcmp.lt.s32.totalorder %v705, 2
        %vm707 = vcmp.eq.s32.totalorder %v705, 0
        %v708 = vxor.u32 %v703, 2147483648
        %v709 = vsel %vm707, %v702, %v708
        %vm710 = vcmp.eq.s32.totalorder %v705, 2
        %v711 = vxor.u32 %v702, 2147483648
        %v712 = vsel %vm710, %v711, %v703
        %v713 = vsel %vm706, %v709, %v712
        %v714 = vsel %vm704, nan, %v713
        %v715 = vand.u32 2147483647, %v611
        %vm716 = vcmp.le.f32.partialorder %v715, 0.7853982
        %vm717 = vcmp.lt.s32.totalorder %v611, 0
        %v718 = vand.u32 %v611, 2139095040
        %v719 = vshrl.u32 %v718, 23
        %v720 = vsub.s32 %v719, 127
        %v721 = vand.u32 2147483647, %v611
        %v722 = vand.u32 %v721, 8388607
        %v723 = vor.u32 %v722, 8388608
        %v724 = vsub.s32 0, %v723
        %v725 = vadd.s32 %v720, 1
        %vm726 = vcmp.gt.s32.totalorder %v725, 0
        %v727 = vsel %vm726, %v725, 0
        %v728 = vshrl.u32 %v727, 5
        %v729 = vand.u32 %v727, 31
        %v730 = vsub.s32 32, %v729
        %v731 = vshrl.u32 683565275, %v730
        %v732 = vshll.u32 683565275, %v729
        %v733 = vshrl.u32 2475754826, %v730
        %v734 = vor.u32 %v732, %v733
        %v735 = vshll.u32 2475754826, %v729
        %v736 = vshrl.u32 2131351028, %v730
        %v737 = vor.u32 %v735, %v736
        %v738 = vshll.u32 2131351028, %v729
        %v739 = vshrl.u32 2102212464, %v730
        %v740 = vor.u32 %v738, %v739
        %v741 = vshll.u32 2102212464, %v729
        %v742 = vshrl.u32 920167782, %v730
        %v743 = vor.u32 %v741, %v742
        %v744 = vshll.u32 920167782, %v729
        %v745 = vshrl.u32 1326507024, %v730
        %v746 = vor.u32 %v744, %v745
        %vm747 = vcmp.lt.s32.totalorder %v728, 1
        %vm748 = vcmp.lt.s32.totalorder %v728, 2
        %vm749 = vcmp.lt.s32.totalorder %v728, 3
        %vm750 = vcmp.lt.s32.totalorder %v728, 4
        %v751 = vsel %vm747, %v731, %v734
        %v752 = vsel %vm750, %v740, 2102212464
        %v753 = vsel %vm749, %v737, %v752
        %v754 = vsel %vm748, %v751, %v753
        %v755 = vsel %vm747, %v734, %v737
        %v756 = vsel %vm750, %v743, 920167782
        %v757 = vsel %vm749, %v740, %v756
        %v758 = vsel %vm748, %v755, %v757
        %v759 = vsel %vm747, %v737, %v740
        %v760 = vsel %vm750, %v746, 1326507024
        %v761 = vsel %vm749, %v743, %v760
        %v762 = vsel %vm748, %v759, %v761
        %v763 = vshll.u32 %v723, 8
        %v764 = vmul.u32.u64.compose %v763, %v762
        %v765 = vextract.low.u32 %v764
        %v766 = vextract.high.u32 %v764
        %v767 = vmul.u32.u64.compose %v763, %v758
        %v768 = vextract.low.u32 %v767
        %v769 = vextract.high.u32 %v767
        %v770 = vmul.u32 %v763, %v754
        %v771 = vadd.s32 %v766, %v768
        %vm772 = vc.u32 %v766, %v768
        %v773 = vadd.s32 %v769, 1
        %v774 = vsel %vm772, %v773, %v769
        %v775 = vadd.s32 %v770, %v774
        %v776 = vadd.s32 %v775, 536870912
        %v777 = vshrl.u32 %v776, 30
        %v778 = vshll.u32 %v777, 30
        %v779 = vsub.s32 %v775, %v778
        %vm780 = vcmp.lt.s32.totalorder %v779, 0
        %v781 = vsub.s32 0, %v779
        %v782 = vsel %vm780, %v781, %v779
        %v783 = vclz %v782
        %v784 = vsub.s32 %v783, 2
        %vm785 = vcmp.gt.s32.totalorder 0, %v784
        %v786 = vsel %vm785, 0, %v784
        %v787 = vsub.s32 32, %v786
        %v788 = vshll.u32 %v779, %v786
        %v789 = vshrl.u32 %v771, %v787
        %v790 = vor.u32 %v788, %v789
        %v791 = vsub.s32 4294967266, %v786
        %v792 = vadd.s32 %v791, 127
        %v793 = vshll.u32 %v792, 23
        %v794 = vor.u32 4788187, %v793
        %v795 = vand.u32 2147483647, %v794
        %v797 = vcvt.s32.f32 %v790
        %v798 = vmul.f32 %v797, %v795
        %v799 = vxor.u32 %v798, 2147483648
        %v800 = vsel %vm717, %v799, %v798
        %v801 = vsub.s32 4, %v777
        %v802 = vsel %vm717, %v801, %v777
        %v803 = vsel %vm716, %v611, %v800
        %v804 = vsel %vm716, 0, %v802
        %v805 = vcosq.f32.pop %v803
        %v806 = vsinq.f32.pop %v803
        %vm807 = vweird.f32 %v611
        %v808 = vadd.s32 %v804, 3
        %v809 = vand.u32 %v808, 3
        %vm810 = vcmp.lt.s32.totalorder %v809, 2
        %vm811 = vcmp.eq.s32.totalorder %v809, 0
        %v812 = vxor.u32 %v806, 2147483648
        %v813 = vsel %vm811, %v805, %v812
        %vm814 = vcmp.eq.s32.totalorder %v809, 2
        %v815 = vxor.u32 %v805, 2147483648
        %v816 = vsel %vm814, %v815, %v806
        %v817 = vsel %vm810, %v813, %v816
        %v818 = vsel %vm807, nan, %v817
        %v819 = vsub.f32 0.0, %v714
        %v820 = vmul.f32 %v818, %v611
        %v821 = vmul.f32 %v610, %v610
        %v822 = vsub.f32 1.0, %v821
        %v823 = vmax.f32 %v822, 0.0
        %v824 = vmin.f32 %v823, 1.0
        %v825 = vrsqrt.pop %v824
        %v826 = vmul.f32 %v824, %v825
        %vm827 = vcmp.eq.f32.partialorder %v824, inf
        %v828 = vsel %vm827, %v824, %v826
        %vm829 = vcmp.eq.f32.partialorder %v824, 0.0
        %v830 = vand.u32 %v824, 2147483648
        %v831 = vsel %vm829, %v830, %v828
        %v832 = vmul.f32 %v610, %v714
        %v833 = vmul.f32 %v831, %v818
        %v834 = vsub.f32 %v832, %v833
        %vm835 = vcmp.gt.f32.partialorder %v610, %v819
        %v836 = vsub.f32 %v610, %v820
        %v837 = vsel %vm835, %v834, %v836
        %839 = vset.pattern.permute.xlu0 0
        %840 = vperm.xlu0 %839, %v837
        %v841 = vpop.permute.xlu0 %840
        %v843 = vsel %vm607, %v841, %v597
        %v844 = vmul.f32 %v843, 30.0
        %845 = vst [vmem:[%s267] sm:$0xff] %v844
        %s846 = sand.u32 %s147, 1
        %s847 = scalar_lea.sflag [#allocation4], %s846
        %s848 = sand.u32 %s147, 1
        %s849 = smul.addr %s848, 8
        %s850 = scalar_lea.vmem [#allocation5], %s849
        // Predicated region
        $region41: #{tpu_custom_call.1} parent=35 // pred_check
          %p851 = pneg %p157
        $region42: #{tpu_custom_call.1} parent=35 // pred_check_branch
          %853 = sbr.rel (%p851) target = $region44
        $region43: #{tpu_custom_call.1} parent=35 // pred_region
          %s855 = ssub.s32 128, 128
          %856 = vsyncadd %s847, %s855
          %s857 = smul.addr %s26, 2
          %s858 = sadd.s32 %s25, %s857
          %s859 = smul.addr %s858, 128
          %s860 = scalar_lea.hbm %s4, %s859
          %s862 = sshll.u32 %s850, 4
          %s863 = int_to_ptr.vmem [resolvable:$true] %s862
          %865 = dma.vmem_to_hbm [thread:$0]  %s863, 128, %s860, %s847
        $region44: #{tpu_custom_call.1} parent=35 // pred_fallthru
          _
      $region36: #{tpu_custom_call.1} parent=5 // pred_fallthru
        _
      %p866 = scmp.le.s32.totalorder 2, %s16
      // Predicated region
      $region45: #{tpu_custom_call.1} parent=5 // pred_check
        %p867 = pneg %p866
      $region46: #{tpu_custom_call.1} parent=5 // pred_check_branch
        %869 = sbr.rel (%p867) target = $region48
      $region47: #{tpu_custom_call.1} parent=5 // pred_region
        %s870 = ssub.s32 %s16, 2
        // Predicated region
        $region49: #{tpu_custom_call.1} parent=47 // pred_check
          %p871 = pneg %p163
        $region50: #{tpu_custom_call.1} parent=47 // pred_check_branch
          %873 = sbr.rel (%p871) target = $region52
        $region51: #{tpu_custom_call.1} parent=47 // pred_region
          %s874 = sand.u32 %s148, 1
          %s875 = scalar_lea.sflag [#allocation4], %s874
          %s876 = sand.u32 %s148, 1
          %s877 = smul.addr %s876, 8
          %s878 = scalar_lea.vmem [#allocation5], %s877
          %879 = dma.done %s875, 128
        $region52: #{tpu_custom_call.1} parent=47 // pred_fallthru
          _
      $region48: #{tpu_custom_call.1} parent=5 // pred_fallthru
        _
    $region6: #{tpu_custom_call.1} parent=1 // loop_footer
      %s20 = sadd.s32 1, %s16
    $region7: #{tpu_custom_call.1} parent=1 // loop_footer_branch
      %15 = sbr.rel target = $region3
    $region8: #{tpu_custom_call.1} parent=1 // loop_exit
      _
    %880 = vsyncpa [#allocation3], 1
    %s881 = scalar_lea.sflag [#allocation3], 1
    %882 = vsyncpa %s881, 1
    %883 = vsyncpa [#allocation4], 1
    %s884 = scalar_lea.sflag [#allocation4], 1
    %885 = vsyncpa %s884, 1

</llo_original>
